<compile_context>
chip_gen: v7x
topology: tpu7x:2x2x1
jax: 0.10.0
libtpu: 0.0.40
codegen_flags: <defaults>
</compile_context>

<pallas_src>
import functools

import jax
import jax.numpy as jnp
from jax.experimental import pallas as pl
from jax.experimental.pallas import tpu as pltpu


def _pono_stats(x_f32, eps, c):
    """x_f32: (1, C, T) fp32 tile -> (centered, mean, std, inv_std), stats (1,1,T)."""
    mean = jnp.mean(x_f32, axis=1, keepdims=True)                    # (1, 1, T)
    centered = x_f32 - mean
    inv_dof = 1.0 / float(max(c - 1, 1))                             # torch var: unbiased
    var = jnp.sum(centered * centered, axis=1, keepdims=True) * inv_dof
    std = jnp.sqrt(var + eps)
    inv_std = 1.0 / std                                              # only T divides
    return centered, mean, std, inv_std


def _pono_affine_kernel(gamma_ref, beta_ref, x_ref, o_ref, mean_ref, std_ref,
                        *, eps, c):
    x = x_ref[...].astype(jnp.float32)                               # (1, C, T)
    centered, mean, std, inv_std = _pono_stats(x, eps, c)
    g = gamma_ref[...].astype(jnp.float32)                           # (1, 1, T)
    b = beta_ref[...].astype(jnp.float32)                            # (1, 1, T)
    scale = g * inv_std                                              # (1, 1, T)
    o_ref[...] = (centered * scale + b).astype(o_ref.dtype)          # fma over (C, T)
    mean_ref[...] = mean.astype(mean_ref.dtype)
    std_ref[...] = std.astype(std_ref.dtype)


def _pono_plain_kernel(x_ref, o_ref, mean_ref, std_ref, *, eps, c):
    x = x_ref[...].astype(jnp.float32)                               # (1, C, T)
    centered, mean, std, inv_std = _pono_stats(x, eps, c)
    o_ref[...] = (centered * inv_std).astype(o_ref.dtype)
    mean_ref[...] = mean.astype(mean_ref.dtype)
    std_ref[...] = std.astype(std_ref.dtype)


def _choose_spatial_tile(hw, c, dtype_bytes, target_bytes=4 * 1024 * 1024):
    """Largest lane-dense (multiple-of-128) spatial tile with an x block <= target.

    4 MiB blocks, double-buffered for both the input and output x-sized arrays,
    stay well under the default scoped-VMEM limits on v5e/v6e/v7x while being
    large enough to amortize per-grid-step overhead.
    """
    if hw <= 128:
        return hw                                   # full last dim: always legal
    max_cols = max(128, target_bytes // max(1, c * dtype_bytes))
    tile = (max_cols // 128) * 128
    hw_padded = ((hw + 127) // 128) * 128
    return max(128, min(tile, hw_padded))


def pono_forward(x, gamma=None, beta=None, eps=1e-5):
    """Pallas PONO forward.

    x: (N, C, H, W). gamma/beta: (1, 1, H, W) or None (affine=False).
    Returns (y, mean, std); mean/std have shape (N, 1, H, W).
    """
    N, C, H, W = x.shape
    HW = H * W
    dtype = x.dtype

    affine = (gamma is not None) or (beta is not None)
    if affine:
        if gamma is None:
            gamma = jnp.ones((1, 1, H, W), dtype=dtype)
        if beta is None:
            beta = jnp.zeros((1, 1, H, W), dtype=dtype)

    x3 = x.reshape(N, C, HW)

    tile = _choose_spatial_tile(HW, C, jnp.dtype(dtype).itemsize)
    grid = (N, pl.cdiv(HW, tile))

    x_spec = pl.BlockSpec((1, C, tile), lambda n, s: (n, 0, s))
    o_spec = pl.BlockSpec((1, C, tile), lambda n, s: (n, 0, s))
    stat_spec = pl.BlockSpec((1, 1, tile), lambda n, s: (n, 0, s))

    out_shape = (
        jax.ShapeDtypeStruct((N, C, HW), dtype),
        jax.ShapeDtypeStruct((N, 1, HW), dtype),
        jax.ShapeDtypeStruct((N, 1, HW), dtype),
    )
    out_specs = (o_spec, stat_spec, stat_spec)

    # Every block is independent (the reduction is fully inside a block), so
    # both grid axes are parallel -> megacore/v7x can shard across TensorCores.
    compiler_params = pltpu.CompilerParams(
        dimension_semantics=("parallel", "parallel"))

    if affine:
        g3 = gamma.reshape(1, 1, HW)
        b3 = beta.reshape(1, 1, HW)
        gb_spec = pl.BlockSpec((1, 1, tile), lambda n, s: (0, 0, s))
        kernel = functools.partial(_pono_affine_kernel, eps=float(eps), c=C)
        y3, mean3, std3 = pl.pallas_call(
            kernel,
            out_shape=out_shape,
            grid_spec=pltpu.PrefetchScalarGridSpec(
                num_scalar_prefetch=0,
                grid=grid,
                in_specs=[gb_spec, gb_spec, x_spec],
                out_specs=out_specs),
            compiler_params=compiler_params,
        )(g3, b3, x3)
    else:
        kernel = functools.partial(_pono_plain_kernel, eps=float(eps), c=C)
        y3, mean3, std3 = pl.pallas_call(
            kernel,
            out_shape=out_shape,
            grid_spec=pltpu.PrefetchScalarGridSpec(
                num_scalar_prefetch=0,
                grid=grid,
                in_specs=[x_spec],
                out_specs=out_specs),
            compiler_params=compiler_params,
        )(x3)

    return (y3.reshape(N, C, H, W),
            mean3.reshape(N, 1, H, W),
            std3.reshape(N, 1, H, W))


if __name__ == "__main__":
    key = jax.random.PRNGKey(0)
    kx, kg, kb = jax.random.split(key, 3)

    N, C, H, W = 2, 4, 16, 16
    eps = 1e-5

    x = jax.random.normal(kx, (N, C, H, W), dtype=jnp.float32)
    # Module init is gamma=ones, beta=zeros; perturb so the affine path is
    # actually exercised (deterministic via PRNGKey(0)).
    gamma = 1.0 + 0.1 * jax.random.normal(kg, (1, 1, H, W), dtype=jnp.float32)
    beta = 0.05 * jax.random.normal(kb, (1, 1, H, W), dtype=jnp.float32)

    y, mean, std = pono_forward(x, gamma=gamma, beta=beta, eps=eps)
    jax.block_until_ready((y, mean, std))

    # Pure-JAX reference (same semantics as the PyTorch module; var is unbiased).
    mean_r = x.mean(axis=1, keepdims=True)
    std_r = jnp.sqrt(x.var(axis=1, keepdims=True, ddof=1) + eps)
    y_r = (x - mean_r) / std_r * gamma + beta

    assert jnp.allclose(mean, mean_r, atol=1e-5, rtol=1e-5), "mean mismatch"
    assert jnp.allclose(std, std_r, atol=1e-5, rtol=1e-5), "std mismatch"
    assert jnp.allclose(y, y_r, atol=1e-5, rtol=1e-5), "output mismatch"

    # affine=False branch (module with affine=False returns normalized x only).
    y0, m0, s0 = pono_forward(x, eps=eps)
    jax.block_until_ready((y0, m0, s0))
    assert jnp.allclose(y0, (x - mean_r) / std_r, atol=1e-5, rtol=1e-5)
    assert jnp.allclose(m0, mean_r, atol=1e-5, rtol=1e-5)
    assert jnp.allclose(s0, std_r, atol=1e-5, rtol=1e-5)

    print("KERNEL_OK")
</pallas_src>

<mosaic_0001>
module attributes {stable_mosaic.version = 11 : i64} {
  func.func @_pono_affine_kernel(%arg0: i32, %arg1: i32, %arg2: memref<1x1x256xf32, #tpu.memory_space<vmem>>, %arg3: memref<1x1x256xf32, #tpu.memory_space<vmem>>, %arg4: memref<1x4x256xf32, #tpu.memory_space<vmem>>, %arg5: memref<1x4x256xf32, #tpu.memory_space<vmem>>, %arg6: memref<1x1x256xf32, #tpu.memory_space<vmem>>, %arg7: memref<1x1x256xf32, #tpu.memory_space<vmem>>) attributes {dimension_semantics = [#tpu.dimension_semantics<parallel>, #tpu.dimension_semantics<parallel>], iteration_bounds = array<i64: 2, 1>, scalar_prefetch = 0 : i64, scratch_operands = 0 : i64, tpu.core_type = #tpu.core_type<tc>, window_params = [{transform_indices = @transform_0, window_bounds = array<i64: 1, 1, 256>}, {transform_indices = @transform_1, window_bounds = array<i64: 1, 1, 256>}, {transform_indices = @transform_2, window_bounds = array<i64: 1, 4, 256>}, {transform_indices = @transform_3, window_bounds = array<i64: 1, 4, 256>}, {transform_indices = @transform_4, window_bounds = array<i64: 1, 1, 256>}, {transform_indices = @transform_5, window_bounds = array<i64: 1, 1, 256>}]} {
    %c0 = arith.constant 0 : index
    %c0_0 = arith.constant 0 : index
    %c0_1 = arith.constant 0 : index
    %0 = vector.load %arg4[%c0, %c0_0, %c0_1] : memref<1x4x256xf32, #tpu.memory_space<vmem>>, vector<1x4x256xf32>
    %cst = arith.constant dense<0.000000e+00> : vector<1x256xf32>
    %1 = vector.multi_reduction <add>, %0, %cst [1] : vector<1x4x256xf32> to vector<1x256xf32>
    %2 = vector.shape_cast %1 : vector<1x256xf32> to vector<1x1x256xf32>
    %cst_2 = arith.constant 4.000000e+00 : f32
    %3 = vector.broadcast %cst_2 : f32 to vector<1x1x256xf32>
    %4 = arith.divf %2, %3 : vector<1x1x256xf32>
    %5 = vector.broadcast %4 : vector<1x1x256xf32> to vector<1x4x256xf32>
    %6 = arith.subf %0, %5 : vector<1x4x256xf32>
    %7 = arith.mulf %6, %6 : vector<1x4x256xf32>
    %cst_3 = arith.constant dense<0.000000e+00> : vector<1x256xf32>
    %8 = vector.multi_reduction <add>, %7, %cst_3 [1] : vector<1x4x256xf32> to vector<1x256xf32>
    %9 = vector.shape_cast %8 : vector<1x256xf32> to vector<1x1x256xf32>
    %cst_4 = arith.constant 0.333333343 : f32
    %10 = vector.broadcast %cst_4 : f32 to vector<1x1x256xf32>
    %11 = arith.mulf %9, %10 : vector<1x1x256xf32>
    %cst_5 = arith.constant 9.99999974E-6 : f32
    %12 = vector.broadcast %cst_5 : f32 to vector<1x1x256xf32>
    %13 = arith.addf %11, %12 : vector<1x1x256xf32>
    %14 = math.sqrt %13 : vector<1x1x256xf32>
    %cst_6 = arith.constant 1.000000e+00 : f32
    %15 = vector.broadcast %cst_6 : f32 to vector<1x1x256xf32>
    %16 = arith.divf %15, %14 : vector<1x1x256xf32>
    %c0_7 = arith.constant 0 : index
    %c0_8 = arith.constant 0 : index
    %c0_9 = arith.constant 0 : index
    %17 = vector.load %arg2[%c0_7, %c0_8, %c0_9] : memref<1x1x256xf32, #tpu.memory_space<vmem>>, vector<1x1x256xf32>
    %c0_10 = arith.constant 0 : index
    %c0_11 = arith.constant 0 : index
    %c0_12 = arith.constant 0 : index
    %18 = vector.load %arg3[%c0_10, %c0_11, %c0_12] : memref<1x1x256xf32, #tpu.memory_space<vmem>>, vector<1x1x256xf32>
    %19 = arith.mulf %17, %16 : vector<1x1x256xf32>
    %20 = vector.broadcast %19 : vector<1x1x256xf32> to vector<1x4x256xf32>
    %21 = arith.mulf %6, %20 : vector<1x4x256xf32>
    %22 = vector.broadcast %18 : vector<1x1x256xf32> to vector<1x4x256xf32>
    %23 = arith.addf %21, %22 : vector<1x4x256xf32>
    %c0_13 = arith.constant 0 : index
    %c0_14 = arith.constant 0 : index
    %c0_15 = arith.constant 0 : index
    %24 = vector.load %arg5[%c0_13, %c0_14, %c0_15] : memref<1x4x256xf32, #tpu.memory_space<vmem>>, vector<1x4x256xf32>
    tpu.vector_store %arg5[%c0_13, %c0_14, %c0_15], %23 {strides = array<i32>} : memref<1x4x256xf32, #tpu.memory_space<vmem>>, vector<1x4x256xf32>,
    %c0_16 = arith.constant 0 : index
    %c0_17 = arith.constant 0 : index
    %c0_18 = arith.constant 0 : index
    %25 = vector.load %arg6[%c0_16, %c0_17, %c0_18] : memref<1x1x256xf32, #tpu.memory_space<vmem>>, vector<1x1x256xf32>
    tpu.vector_store %arg6[%c0_16, %c0_17, %c0_18], %4 {strides = array<i32>} : memref<1x1x256xf32, #tpu.memory_space<vmem>>, vector<1x1x256xf32>,
    %c0_19 = arith.constant 0 : index
    %c0_20 = arith.constant 0 : index
    %c0_21 = arith.constant 0 : index
    %26 = vector.load %arg7[%c0_19, %c0_20, %c0_21] : memref<1x1x256xf32, #tpu.memory_space<vmem>>, vector<1x1x256xf32>
    tpu.vector_store %arg7[%c0_19, %c0_20, %c0_21], %14 {strides = array<i32>} : memref<1x1x256xf32, #tpu.memory_space<vmem>>, vector<1x1x256xf32>,
    return
  }
  func.func @transform_0(%arg0: i32, %arg1: i32) -> (i32, i32, i32) {
    %c0_i32 = arith.constant 0 : i32
    %c0_i32_0 = arith.constant 0 : i32
    %c0_i32_1 = arith.constant 0 : i32
    return %c0_i32, %c0_i32_0, %arg1 : i32, i32, i32
  }
  func.func @transform_1(%arg0: i32, %arg1: i32) -> (i32, i32, i32) {
    %c0_i32 = arith.constant 0 : i32
    %c0_i32_0 = arith.constant 0 : i32
    %c0_i32_1 = arith.constant 0 : i32
    return %c0_i32, %c0_i32_0, %arg1 : i32, i32, i32
  }
  func.func @transform_2(%arg0: i32, %arg1: i32) -> (i32, i32, i32) {
    %c0_i32 = arith.constant 0 : i32
    %c0_i32_0 = arith.constant 0 : i32
    return %arg0, %c0_i32, %arg1 : i32, i32, i32
  }
  func.func @transform_3(%arg0: i32, %arg1: i32) -> (i32, i32, i32) {
    %c0_i32 = arith.constant 0 : i32
    %c0_i32_0 = arith.constant 0 : i32
    return %arg0, %c0_i32, %arg1 : i32, i32, i32
  }
  func.func @transform_4(%arg0: i32, %arg1: i32) -> (i32, i32, i32) {
    %c0_i32 = arith.constant 0 : i32
    %c0_i32_0 = arith.constant 0 : i32
    return %arg0, %c0_i32, %arg1 : i32, i32, i32
  }
  func.func @transform_5(%arg0: i32, %arg1: i32) -> (i32, i32, i32) {
    %c0_i32 = arith.constant 0 : i32
    %c0_i32_0 = arith.constant 0 : i32
    return %arg0, %c0_i32, %arg1 : i32, i32, i32
  }
}

</mosaic_0001>

<llo_original>
// kernel: tpu_custom_call.1
$region0: #{tpu_custom_call.1}
  #allocation0 [shape = 'u32[]', space=smem, size = 0x4, offset = 0x4, fixed_abs, tag = 'smem constant byte address 0x4 - core index']
  #allocation1 [shape = 'u32[144,128]{1,0:T(1,128)}', space=vmem, size = 0x12000, scoped, tag = 'internal scratch']
  %s0 = inlined_call_operand.hbm [shape: f32[1,1,256], index: 0, kind: input, shape index: {}]
  %s1 = inlined_call_operand.vmem [shape: f32[1,1,256], index: 1, kind: input, shape index: {}]
  %s2 = inlined_call_operand.hbm [shape: f32[2,4,256], index: 2, kind: input, shape index: {}]
  %s3 = inlined_call_operand.hbm [shape: f32[2,4,256], index: 3, kind: output, shape index: {0}]
  %s4 = inlined_call_operand.hbm [shape: f32[2,1,256], index: 4, kind: output, shape index: {1}]
  %s5 = inlined_call_operand.hbm [shape: f32[2,1,256], index: 5, kind: output, shape index: {2}]
  %6 = xla_tuple %s3, %s4, %s5
  %s7 = sld [smem:[#allocation0]]
  $region69: #{tpu_custom_call.1} parent=0
    _
  %s9 = ssub.s32 1, %s7
  %s10 = scalar_select 0, %s9, %s7
  $region1: #{tpu_custom_call.1} parent=0
    #allocation2 [shape = 'u8[1024]{0}', space=vmem, size = 0x400, scoped, tag = 'input window, operand 0, single buffered']
    #allocation3 [shape = 's32[2]{0}', space=sflag, size = 0x8, scoped, tag = 'scoped memory for tpu_custom_call.1']
    #allocation4 [shape = 's32[2]{0}', space=sflag, size = 0x8, scoped, tag = 'scoped memory for tpu_custom_call.1']
    #allocation5 [shape = 'u8[8192]{0}', space=vmem, size = 0x2000, scoped, tag = 'input window, operand 2']
    #allocation6 [shape = 's32[2]{0}', space=sflag, size = 0x8, scoped, tag = 'scoped memory for tpu_custom_call.1']
    #allocation7 [shape = 'u8[8192]{0}', space=vmem, size = 0x2000, scoped, tag = 'output window, operand 0']
    #allocation8 [shape = 'u8[2048]{0}', space=vmem, size = 0x800, scoped, tag = 'output window, operand 1']
    #allocation9 [shape = 's32[2]{0}', space=sflag, size = 0x8, scoped, tag = 'scoped memory for tpu_custom_call.1']
    #allocation10 [shape = 'u8[2048]{0}', space=vmem, size = 0x800, scoped, tag = 'output window, operand 2']
    %11 = vsyncpa [#allocation3], 0
    %12 = vsyncpa [#allocation6], 0
    %s13 = scalar_lea.sflag [#allocation6], 1
    %14 = vsyncpa %s13, 0
    %15 = vsyncpa [#allocation4], 0
    %s16 = scalar_lea.sflag [#allocation4], 1
    %17 = vsyncpa %s16, 0
    %18 = vsyncpa [#allocation9], 0
    %s19 = scalar_lea.sflag [#allocation9], 1
    %20 = vsyncpa %s19, 0
    loop: start=0, step=1, limit=4
    $region2: #{tpu_custom_call.1} parent=1 // loop_pre_header
      _
    $region3: #{tpu_custom_call.1} parent=1 // loop_header
      %s22 = sphi 0, %s26
      %p23 = scmp.ge.s32.totalorder %s22, 4
      %s29 = sphi 0, %s41
      %s30 = sphi 0, %s37
      %s31 = sphi 0, %s29
      %s32 = sphi 0, %s30
      %s33 = sphi 0, %s31
      %s34 = sphi 0, %s32
      %s44 = sphi 0, %s46
      %s47 = sphi 0, %s44
      %s48 = sphi 0, %s47
      %s64 = sphi 0, %s48
      %s70 = sphi 0, %s72
      %s73 = sphi 0, %s70
      %s74 = sphi 0, %s73
      %s90 = sphi 0, %s74
      %s98 = sphi 0, %s100
      %s101 = sphi 0, %s98
      %s102 = sphi 0, %s101
      %s118 = sphi 0, %s102
      %s126 = sphi 0, %s128
      %s129 = sphi 0, %s126
      %s130 = sphi 0, %s129
      %s146 = sphi 0, %s130
      %s154 = sphi 0, %s156
      %s157 = sphi 0, %s154
      %s158 = sphi 0, %s157
      %s174 = sphi 0, %s158
      %s182 = sphi 0, %s184
      %s185 = sphi 0, %s182
      %s186 = sphi 0, %s185
      %s202 = sphi 0, %s186
    $region4: #{tpu_custom_call.1} parent=1 // loop_header_branch
      %25 = sbr.rel (%p23) target = $region8
    $region5: #{tpu_custom_call.1} parent=1 // loop_body
      %s27 = ssub.s32 %s22, 1
      %s28 = ssub.s32 %s22, 2
      %s35 = sadd.s32 1, %s30
      %p36 = scmp.ge.s32.totalorder %s35, 1
      %s37 = scalar_select %p36, 0, %s35
      %s38 = sadd.s32 1, %s29
      %s39 = scalar_select %p36, %s38, %s29
      %p40 = scmp.ge.s32.totalorder %s39, 2
      %s41 = scalar_select %p40, 0, %s39
      %s42 = ssub.s32 %s30, %s37
      %p43 = scmp.eq.s32.totalorder %s42, 0
      %s45 = sadd.s32 %s44, 1
      %s46 = scalar_select %p43, %s44, %s45
      %p49 = pneg %p43
      %p50 = scmp.eq.s32.totalorder %s22, 1
      %p51 = por %p49, %p50
      %p52 = scmp.ne.s32.totalorder %s44, %s47
      %p53 = scmp.eq.s32.totalorder %s22, 0
      %p54 = por %p52, %p53
      %p55 = scmp.ne.s32.totalorder %s44, %s47
      %p56 = scmp.eq.s32.totalorder %s27, 1
      %p57 = por %p55, %p56
      %p58 = scmp.ne.s32.totalorder %s47, %s48
      %p59 = scmp.eq.s32.totalorder %s27, 0
      %p60 = por %p58, %p59
      %p61 = scmp.ne.s32.totalorder %s47, %s48
      %p62 = scmp.eq.s32.totalorder %s28, 1
      %p63 = por %p61, %p62
      %p65 = scmp.ne.s32.totalorder %s48, %s64
      %p66 = scmp.eq.s32.totalorder %s28, 0
      %p67 = por %p65, %p66
      %s68 = ssub.s32 %s30, %s37
      %p69 = scmp.eq.s32.totalorder %s68, 0
      %s71 = sadd.s32 %s70, 1
      %s72 = scalar_select %p69, %s70, %s71
      %p75 = pneg %p69
      %p76 = scmp.eq.s32.totalorder %s22, 1
      %p77 = por %p75, %p76
      %p78 = scmp.ne.s32.totalorder %s70, %s73
      %p79 = scmp.eq.s32.totalorder %s22, 0
      %p80 = por %p78, %p79
      %p81 = scmp.ne.s32.totalorder %s70, %s73
      %p82 = scmp.eq.s32.totalorder %s27, 1
      %p83 = por %p81, %p82
      %p84 = scmp.ne.s32.totalorder %s73, %s74
      %p85 = scmp.eq.s32.totalorder %s27, 0
      %p86 = por %p84, %p85
      %p87 = scmp.ne.s32.totalorder %s73, %s74
      %p88 = scmp.eq.s32.totalorder %s28, 1
      %p89 = por %p87, %p88
      %p91 = scmp.ne.s32.totalorder %s74, %s90
      %p92 = scmp.eq.s32.totalorder %s28, 0
      %p93 = por %p91, %p92
      %s94 = ssub.s32 %s29, %s41
      %s95 = ssub.s32 %s30, %s37
      %s96 = sor.u32 %s94, %s95
      %p97 = scmp.eq.s32.totalorder %s96, 0
      %s99 = sadd.s32 %s98, 1
      %s100 = scalar_select %p97, %s98, %s99
      %p103 = pneg %p97
      %p104 = scmp.eq.s32.totalorder %s22, 1
      %p105 = por %p103, %p104
      %p106 = scmp.ne.s32.totalorder %s98, %s101
      %p107 = scmp.eq.s32.totalorder %s22, 0
      %p108 = por %p106, %p107
      %p109 = scmp.ne.s32.totalorder %s98, %s101
      %p110 = scmp.eq.s32.totalorder %s27, 1
      %p111 = por %p109, %p110
      %p112 = scmp.ne.s32.totalorder %s101, %s102
      %p113 = scmp.eq.s32.totalorder %s27, 0
      %p114 = por %p112, %p113
      %p115 = scmp.ne.s32.totalorder %s101, %s102
      %p116 = scmp.eq.s32.totalorder %s28, 1
      %p117 = por %p115, %p116
      %p119 = scmp.ne.s32.totalorder %s102, %s118
      %p120 = scmp.eq.s32.totalorder %s28, 0
      %p121 = por %p119, %p120
      %s122 = ssub.s32 %s29, %s41
      %s123 = ssub.s32 %s30, %s37
      %s124 = sor.u32 %s122, %s123
      %p125 = scmp.eq.s32.totalorder %s124, 0
      %s127 = sadd.s32 %s126, 1
      %s128 = scalar_select %p125, %s126, %s127
      %p131 = pneg %p125
      %p132 = scmp.eq.s32.totalorder %s22, 1
      %p133 = por %p131, %p132
      %p134 = scmp.ne.s32.totalorder %s126, %s129
      %p135 = scmp.eq.s32.totalorder %s22, 0
      %p136 = por %p134, %p135
      %p137 = scmp.ne.s32.totalorder %s126, %s129
      %p138 = scmp.eq.s32.totalorder %s27, 1
      %p139 = por %p137, %p138
      %p140 = scmp.ne.s32.totalorder %s129, %s130
      %p141 = scmp.eq.s32.totalorder %s27, 0
      %p142 = por %p140, %p141
      %p143 = scmp.ne.s32.totalorder %s129, %s130
      %p144 = scmp.eq.s32.totalorder %s28, 1
      %p145 = por %p143, %p144
      %p147 = scmp.ne.s32.totalorder %s130, %s146
      %p148 = scmp.eq.s32.totalorder %s28, 0
      %p149 = por %p147, %p148
      %s150 = ssub.s32 %s29, %s41
      %s151 = ssub.s32 %s30, %s37
      %s152 = sor.u32 %s150, %s151
      %p153 = scmp.eq.s32.totalorder %s152, 0
      %s155 = sadd.s32 %s154, 1
      %s156 = scalar_select %p153, %s154, %s155
      %p159 = pneg %p153
      %p160 = scmp.eq.s32.totalorder %s22, 1
      %p161 = por %p159, %p160
      %p162 = scmp.ne.s32.totalorder %s154, %s157
      %p163 = scmp.eq.s32.totalorder %s22, 0
      %p164 = por %p162, %p163
      %p165 = scmp.ne.s32.totalorder %s154, %s157
      %p166 = scmp.eq.s32.totalorder %s27, 1
      %p167 = por %p165, %p166
      %p168 = scmp.ne.s32.totalorder %s157, %s158
      %p169 = scmp.eq.s32.totalorder %s27, 0
      %p170 = por %p168, %p169
      %p171 = scmp.ne.s32.totalorder %s157, %s158
      %p172 = scmp.eq.s32.totalorder %s28, 1
      %p173 = por %p171, %p172
      %p175 = scmp.ne.s32.totalorder %s158, %s174
      %p176 = scmp.eq.s32.totalorder %s28, 0
      %p177 = por %p175, %p176
      %s178 = ssub.s32 %s29, %s41
      %s179 = ssub.s32 %s30, %s37
      %s180 = sor.u32 %s178, %s179
      %p181 = scmp.eq.s32.totalorder %s180, 0
      %s183 = sadd.s32 %s182, 1
      %s184 = scalar_select %p181, %s182, %s183
      %p187 = pneg %p181
      %p188 = scmp.eq.s32.totalorder %s22, 1
      %p189 = por %p187, %p188
      %p190 = scmp.ne.s32.totalorder %s182, %s185
      %p191 = scmp.eq.s32.totalorder %s22, 0
      %p192 = por %p190, %p191
      %p193 = scmp.ne.s32.totalorder %s182, %s185
      %p194 = scmp.eq.s32.totalorder %s27, 1
      %p195 = por %p193, %p194
      %p196 = scmp.ne.s32.totalorder %s185, %s186
      %p197 = scmp.eq.s32.totalorder %s27, 0
      %p198 = por %p196, %p197
      %p199 = scmp.ne.s32.totalorder %s185, %s186
      %p200 = scmp.eq.s32.totalorder %s28, 1
      %p201 = por %p199, %p200
      %p203 = scmp.ne.s32.totalorder %s186, %s202
      %p204 = scmp.eq.s32.totalorder %s28, 0
      %p205 = por %p203, %p204
      %p206 = scmp.le.s32.totalorder 1, %s22
      %p207 = scmp.lt.s32.totalorder %s22, 3
      %p208 = pnand %p206, %p207
      %p209 = pneg %p208
      // Predicated region
      $region9: #{tpu_custom_call.1} parent=5 // pred_check
        _
      $region10: #{tpu_custom_call.1} parent=5 // pred_check_branch
        %211 = sbr.rel (%p208) target = $region12
      $region11: #{tpu_custom_call.1} parent=5 // pred_region
        %s212 = ssub.s32 %s22, 1
        // Predicated region
        $region13: #{tpu_custom_call.1} parent=11 // pred_check
          %p213 = pneg %p60
        $region14: #{tpu_custom_call.1} parent=11 // pred_check_branch
          %215 = sbr.rel (%p213) target = $region16
        $region15: #{tpu_custom_call.1} parent=11 // pred_region
          %s216 = smul.u32 2, %s32
          %s218 = ssub.s32 32, 32
          %219 = vsyncadd [#allocation3], %s218
          %s220 = smul.addr %s216, 16
          %s221 = scalar_lea.hbm %s0, %s220
          %s223 = sshll.u32 [#allocation2], 4
          %s224 = int_to_ptr.vmem [resolvable:$true] %s223
          %226 = dma.hbm_to_vmem [thread:$0]  %s221, 32, %s224, [#allocation3]
        $region16: #{tpu_custom_call.1} parent=11 // pred_fallthru
          _
        // Predicated region
        $region17: #{tpu_custom_call.1} parent=11 // pred_check
          %p227 = pneg %p86
        $region18: #{tpu_custom_call.1} parent=11 // pred_check_branch
          %229 = sbr.rel (%p227) target = $region20
        $region19: #{tpu_custom_call.1} parent=11 // pred_region
          %s230 = smul.u32 2, %s32
          %p231 = scmp.lt.s32.totalorder %s230, 1
          %s232 = scalar_select %p231, %s230, 1
          %s233 = scalar_lea.vmem %s1, %s232
          %s234 = smul.u32 2, %s32
        $region20: #{tpu_custom_call.1} parent=11 // pred_fallthru
          _
      $region12: #{tpu_custom_call.1} parent=5 // pred_fallthru
        _
      %p235 = scmp.lt.s32.totalorder %s22, 2
      // Predicated region
      $region21: #{tpu_custom_call.1} parent=5 // pred_check
        %p236 = pneg %p235
      $region22: #{tpu_custom_call.1} parent=5 // pred_check_branch
        %238 = sbr.rel (%p236) target = $region24
      $region23: #{tpu_custom_call.1} parent=5 // pred_region
        // Predicated region
        $region25: #{tpu_custom_call.1} parent=23 // pred_check
          %p239 = pneg %p108
        $region26: #{tpu_custom_call.1} parent=23 // pred_check_branch
          %241 = sbr.rel (%p239) target = $region28
        $region27: #{tpu_custom_call.1} parent=23 // pred_region
          %s242 = sand.u32 %s98, 1
          %s243 = scalar_lea.sflag [#allocation6], %s242
          %s244 = sand.u32 %s98, 1
          %s245 = smul.addr %s244, 8
          %s246 = scalar_lea.vmem [#allocation5], %s245
          %s247 = smul.u32 2, %s30
          %s249 = ssub.s32 128, 128
          %250 = vsyncadd %s243, %s249
          %s251 = smul.addr %s29, 2
          %s252 = sadd.s32 %s247, %s251
          %s253 = smul.addr %s252, 64
          %s254 = scalar_lea.hbm %s2, %s253
          %s256 = sshll.u32 %s246, 4
          %s257 = int_to_ptr.vmem [resolvable:$true] %s256
          %259 = dma.hbm_to_vmem [thread:$0]  %s254, 128, %s257, %s243
        $region28: #{tpu_custom_call.1} parent=23 // pred_fallthru
          _
      $region24: #{tpu_custom_call.1} parent=5 // pred_fallthru
        _
      %p260 = scmp.le.s32.totalorder 1, %s22
      %p261 = scmp.lt.s32.totalorder %s22, 3
      %p262 = pnand %p260, %p261
      %p263 = pneg %p262
      // Predicated region
      $region29: #{tpu_custom_call.1} parent=5 // pred_check
        _
      $region30: #{tpu_custom_call.1} parent=5 // pred_check_branch
        %265 = sbr.rel (%p262) target = $region32
      $region31: #{tpu_custom_call.1} parent=5 // pred_region
        %s266 = ssub.s32 %s22, 1
        // Predicated region
        $region33: #{tpu_custom_call.1} parent=31 // pred_check
          %p267 = pneg %p60
        $region34: #{tpu_custom_call.1} parent=31 // pred_check_branch
          %269 = sbr.rel (%p267) target = $region36
        $region35: #{tpu_custom_call.1} parent=31 // pred_region
          %270 = dma.done [#allocation3], 32
        $region36: #{tpu_custom_call.1} parent=31 // pred_fallthru
          _
        %s271 = sand.u32 %s101, 1
        %s272 = scalar_lea.sflag [#allocation6], %s271
        %s273 = sand.u32 %s101, 1
        %s274 = smul.addr %s273, 8
        %s275 = scalar_lea.vmem [#allocation5], %s274
        // Predicated region
        $region37: #{tpu_custom_call.1} parent=31 // pred_check
          %p276 = pneg %p114
        $region38: #{tpu_custom_call.1} parent=31 // pred_check_branch
          %278 = sbr.rel (%p276) target = $region40
        $region39: #{tpu_custom_call.1} parent=31 // pred_region
          %279 = dma.done %s272, 128
        $region40: #{tpu_custom_call.1} parent=31 // pred_fallthru
          _
        %p280 = pneg %p60
        %p281 = pneg %p57
        %s282 = smul.u32 2, %s32
        %p283 = scmp.lt.s32.totalorder %s282, 1
        %s284 = scalar_select %p283, %s282, 1
        %s285 = scalar_lea.vmem %s1, %s284
        %p286 = pneg %p86
        %p287 = pneg %p83
        %s288 = sand.u32 %s101, 1
        %s289 = scalar_lea.sflag [#allocation6], %s288
        %s290 = sand.u32 %s101, 1
        %s291 = smul.addr %s290, 8
        %s292 = scalar_lea.vmem [#allocation5], %s291
        %p293 = pneg %p114
        %p294 = pneg %p111
        %p295 = pneg %p142
        %p296 = pneg %p139
        %s297 = sand.u32 %s129, 1
        %s298 = scalar_lea.sflag [#allocation4], %s297
        %s299 = sand.u32 %s129, 1
        %s300 = smul.addr %s299, 8
        %s301 = scalar_lea.vmem [#allocation7], %s300
        %p302 = pneg %p170
        %p303 = pneg %p167
        %s304 = sand.u32 %s27, 1
        %s305 = scalar_lea.sflag [#allocation9], %s304
        %s306 = sand.u32 %s157, 1
        %s307 = smul.addr %s306, 2
        %s308 = scalar_lea.vmem [#allocation8], %s307
        %p309 = pneg %p198
        %p310 = pneg %p195
        %s311 = sand.u32 %s27, 1
        %s312 = scalar_lea.sflag [#allocation9], %s311
        %s313 = sand.u32 %s185, 1
        %s314 = smul.addr %s313, 2
        %s315 = scalar_lea.vmem [#allocation10], %s314
        %s316 = smul.u32 2, %s32
        %s317 = smul.u32 2, %s32
        %p318 = scmp.lt.s32.totalorder %s317, 1
        %s319 = scalar_select %p318, %s317, 1
        %s320 = scalar_lea.vmem %s1, %s319
        %s321 = smul.u32 2, %s32
        %s322 = smul.u32 2, %s32
        %s323 = smul.u32 2, %s32
        %s324 = smul.u32 2, %s32
        %s325 = smul.u32 2, %s32
        %v326 = vld [vmem:[%s275] sm:$0xff]
        %v328 = vcombine.high %v326, %v326
        %vm330 = vcmask 1043456
        %v331 = vsel %vm330, %v326, 0.0
        %v332 = vrot.slane %v331, 4
        %v333 = vadd.f32 %v331, %v332
        %v334 = vrot.slane %v333, 2
        %v335 = vadd.f32 %v333, %v334
        %v336 = vrot.slane %v335, 1
        %v337 = vadd.f32 %v335, %v336
        %v338 = vsel %vm330, %v328, 0.0
        %v339 = vrot.slane %v338, 4
        %v340 = vadd.f32 %v338, %v339
        %v341 = vrot.slane %v340, 2
        %v342 = vadd.f32 %v340, %v341
        %v343 = vrot.slane %v342, 1
        %v344 = vadd.f32 %v342, %v343
        %v345 = vrcp.pop 4.0
        %v346 = vmul.f32 %v337, %v345
        %v347 = vmul.f32 %v344, %v345
        %v350 = vcombine.low %v346, %v347
        %v352 = vsub.f32 %v326, %v350
        %v353 = vmul.f32 %v352, %v352
        %v355 = vcombine.high %v353, %v353
        %v357 = vsel %vm330, %v353, 0.0
        %v358 = vrot.slane %v357, 4
        %v359 = vadd.f32 %v357, %v358
        %v360 = vrot.slane %v359, 2
        %v361 = vadd.f32 %v359, %v360
        %v362 = vrot.slane %v361, 1
        %v363 = vadd.f32 %v361, %v362
        %v364 = vsel %vm330, %v355, 0.0
        %v365 = vrot.slane %v364, 4
        %v366 = vadd.f32 %v364, %v365
        %v367 = vrot.slane %v366, 2
        %v368 = vadd.f32 %v366, %v367
        %v369 = vrot.slane %v368, 1
        %v370 = vadd.f32 %v368, %v369
        %v371 = vmul.f32 %v363, 0.33333334
        %v372 = vmul.f32 %v370, 0.33333334
        %v373 = vadd.f32 %v371, 1e-05
        %v374 = vadd.f32 %v372, 1e-05
        %v375 = vrsqrt.pop %v373
        %v376 = vmul.f32 %v373, %v375
        %vm377 = vcmp.eq.f32.partialorder %v373, inf
        %v378 = vsel %vm377, %v373, %v376
        %vm379 = vcmp.eq.f32.partialorder %v373, 0.0
        %v380 = vand.u32 %v373, 2147483648
        %v381 = vsel %vm379, %v380, %v378
        %v382 = vrsqrt.pop %v374
        %v383 = vmul.f32 %v374, %v382
        %vm384 = vcmp.eq.f32.partialorder %v374, inf
        %v385 = vsel %vm384, %v374, %v383
        %vm386 = vcmp.eq.f32.partialorder %v374, 0.0
        %v387 = vand.u32 %v374, 2147483648
        %v388 = vsel %vm386, %v387, %v385
        %v389 = vrcp.pop %v381
        %v390 = vmul.f32 1.0, %v389
        %v391 = vrcp.pop %v388
        %v392 = vmul.f32 1.0, %v391
        %v393 = vld [vmem:[#allocation2] sm:$0x3]
        %v394 = vld [vmem:[%s320] sm:$0x3]
        %v397 = vcombine.low %v390, %v392
        %v399 = vunpack.c.l.s4 1966171168
        %v400 = vunpack.c.0.s8 %v399
        %v401 = vlaneseq
        %v402 = vshrl.u32 %v401, 7
        %v403 = vsub.s32 %v400, %v402
        %v404 = vrot.slane %v397, %v403
        %v406 = vunpack.c.l.s4 1966171168
        %v407 = vunpack.c.0.s8 %v406
        %v408 = vlaneseq
        %v409 = vshrl.u32 %v408, 7
        %v410 = vsub.s32 %v407, %v409
        %v411 = vrot.slane %v404, %v410
        %v413 = vmul.f32 %v393, %v411
        %v415 = vlaneseq
        %v416 = vshrl.u32 %v415, 7
        %v417 = vsub.s32 0, %v416
        %v418 = vrot.slane %v413, %v417
        %v419 = vlaneseq
        %v420 = vshrl.u32 %v419, 7
        %v421 = vsub.s32 1, %v420
        %v422 = vrot.slane %v413, %v421
        %v423 = vcombine.low %v418, %v422
        %v425 = vmul.f32 %v352, %v423
        %v427 = vlaneseq
        %v428 = vshrl.u32 %v427, 7
        %v429 = vsub.s32 0, %v428
        %v430 = vrot.slane %v394, %v429
        %v431 = vlaneseq
        %v432 = vshrl.u32 %v431, 7
        %v433 = vsub.s32 1, %v432
        %v434 = vrot.slane %v394, %v433
        %v435 = vcombine.low %v430, %v434
        %v437 = vadd.f32 %v425, %v435
        %438 = vst [vmem:[%s301] sm:$0xff] %v437
        %v440 = vunpack.c.l.s4 1966171168
        %v441 = vunpack.c.0.s8 %v440
        %v442 = vlaneseq
        %v443 = vshrl.u32 %v442, 7
        %v444 = vsub.s32 %v441, %v443
        %v445 = vrot.slane %v350, %v444
        %v447 = vunpack.c.l.s4 1966171168
        %v448 = vunpack.c.0.s8 %v447
        %v449 = vlaneseq
        %v450 = vshrl.u32 %v449, 7
        %v451 = vsub.s32 %v448, %v450
        %v452 = vrot.slane %v445, %v451
        %v454 = vlaneseq
        %vm455 = vcmp.ge.s32.totalorder %v454, 0
        %vm456 = vcmp.lt.s32.totalorder %v454, 256
        %vm457 = vmand %vm455, %vm456
        %458 = vst.msk [vmem:[%s308] sm:$0x3] %vm457, %v452
        %v461 = vcombine.low %v381, %v388
        %v463 = vunpack.c.l.s4 1966171168
        %v464 = vunpack.c.0.s8 %v463
        %v465 = vlaneseq
        %v466 = vshrl.u32 %v465, 7
        %v467 = vsub.s32 %v464, %v466
        %v468 = vrot.slane %v461, %v467
        %v470 = vunpack.c.l.s4 1966171168
        %v471 = vunpack.c.0.s8 %v470
        %v472 = vlaneseq
        %v473 = vshrl.u32 %v472, 7
        %v474 = vsub.s32 %v471, %v473
        %v475 = vrot.slane %v468, %v474
        %477 = vst.msk [vmem:[%s315] sm:$0x3] %vm457, %v475
        %s478 = sand.u32 %s129, 1
        %s479 = scalar_lea.sflag [#allocation4], %s478
        %s480 = sand.u32 %s129, 1
        %s481 = smul.addr %s480, 8
        %s482 = scalar_lea.vmem [#allocation7], %s481
        %s483 = sand.u32 %s27, 1
        %s484 = scalar_lea.sflag [#allocation9], %s483
        %s485 = sand.u32 %s157, 1
        %s486 = smul.addr %s485, 2
        %s487 = scalar_lea.vmem [#allocation8], %s486
        %s488 = sand.u32 %s27, 1
        %s489 = scalar_lea.sflag [#allocation9], %s488
        %s490 = sand.u32 %s185, 1
        %s491 = smul.addr %s490, 2
        %s492 = scalar_lea.vmem [#allocation10], %s491
        // Predicated region
        $region41: #{tpu_custom_call.1} parent=31 // pred_check
          %p493 = pneg %p139
        $region42: #{tpu_custom_call.1} parent=31 // pred_check_branch
          %495 = sbr.rel (%p493) target = $region44
        $region43: #{tpu_custom_call.1} parent=31 // pred_region
          %s496 = smul.u32 2, %s32
          %s498 = ssub.s32 128, 128
          %499 = vsyncadd %s479, %s498
          %s500 = smul.addr %s31, 2
          %s501 = sadd.s32 %s496, %s500
          %s502 = smul.addr %s501, 64
          %s503 = scalar_lea.hbm %s3, %s502
          %s505 = sshll.u32 %s482, 4
          %s506 = int_to_ptr.vmem [resolvable:$true] %s505
          %508 = dma.vmem_to_hbm [thread:$0]  %s506, 128, %s503, %s479
        $region44: #{tpu_custom_call.1} parent=31 // pred_fallthru
          _
        // Predicated region
        $region45: #{tpu_custom_call.1} parent=31 // pred_check
          %p509 = pneg %p167
        $region46: #{tpu_custom_call.1} parent=31 // pred_check_branch
          %511 = sbr.rel (%p509) target = $region48
        $region47: #{tpu_custom_call.1} parent=31 // pred_region
          %s512 = smul.u32 2, %s32
          %s514 = ssub.s32 32, 32
          %515 = vsyncadd %s484, %s514
          %s516 = smul.addr %s31, 2
          %s517 = sadd.s32 %s512, %s516
          %s518 = smul.addr %s517, 16
          %s519 = scalar_lea.hbm %s4, %s518
          %s521 = sshll.u32 %s487, 4
          %s522 = int_to_ptr.vmem [resolvable:$true] %s521
          %524 = dma.vmem_to_hbm [thread:$0]  %s522, 32, %s519, %s484
        $region48: #{tpu_custom_call.1} parent=31 // pred_fallthru
          _
        // Predicated region
        $region49: #{tpu_custom_call.1} parent=31 // pred_check
          %p525 = pneg %p195
        $region50: #{tpu_custom_call.1} parent=31 // pred_check_branch
          %527 = sbr.rel (%p525) target = $region52
        $region51: #{tpu_custom_call.1} parent=31 // pred_region
          %s528 = smul.u32 2, %s32
          %s530 = ssub.s32 32, 32
          %531 = vsyncadd %s489, %s530
          %s532 = smul.addr %s31, 2
          %s533 = sadd.s32 %s528, %s532
          %s534 = smul.addr %s533, 16
          %s535 = scalar_lea.hbm %s5, %s534
          %s537 = sshll.u32 %s492, 4
          %s538 = int_to_ptr.vmem [resolvable:$true] %s537
          %540 = dma.vmem_to_hbm [thread:$0]  %s538, 32, %s535, %s489
        $region52: #{tpu_custom_call.1} parent=31 // pred_fallthru
          _
      $region32: #{tpu_custom_call.1} parent=5 // pred_fallthru
        _
      %p541 = scmp.le.s32.totalorder 2, %s22
      // Predicated region
      $region53: #{tpu_custom_call.1} parent=5 // pred_check
        %p542 = pneg %p541
      $region54: #{tpu_custom_call.1} parent=5 // pred_check_branch
        %544 = sbr.rel (%p542) target = $region56
      $region55: #{tpu_custom_call.1} parent=5 // pred_region
        %s545 = ssub.s32 %s22, 2
        // Predicated region
        $region57: #{tpu_custom_call.1} parent=55 // pred_check
          %p546 = pneg %p145
        $region58: #{tpu_custom_call.1} parent=55 // pred_check_branch
          %548 = sbr.rel (%p546) target = $region60
        $region59: #{tpu_custom_call.1} parent=55 // pred_region
          %s549 = sand.u32 %s130, 1
          %s550 = scalar_lea.sflag [#allocation4], %s549
          %s551 = sand.u32 %s130, 1
          %s552 = smul.addr %s551, 8
          %s553 = scalar_lea.vmem [#allocation7], %s552
          %554 = dma.done %s550, 128
        $region60: #{tpu_custom_call.1} parent=55 // pred_fallthru
          _
        // Predicated region
        $region61: #{tpu_custom_call.1} parent=55 // pred_check
          %p555 = pneg %p173
        $region62: #{tpu_custom_call.1} parent=55 // pred_check_branch
          %557 = sbr.rel (%p555) target = $region64
        $region63: #{tpu_custom_call.1} parent=55 // pred_region
          %s558 = sand.u32 %s28, 1
          %s559 = scalar_lea.sflag [#allocation9], %s558
          %s560 = sand.u32 %s158, 1
          %s561 = smul.addr %s560, 2
          %s562 = scalar_lea.vmem [#allocation8], %s561
          %563 = dma.done %s559, 32
        $region64: #{tpu_custom_call.1} parent=55 // pred_fallthru
          _
        // Predicated region
        $region65: #{tpu_custom_call.1} parent=55 // pred_check
          %p564 = pneg %p201
        $region66: #{tpu_custom_call.1} parent=55 // pred_check_branch
          %566 = sbr.rel (%p564) target = $region68
        $region67: #{tpu_custom_call.1} parent=55 // pred_region
          %s567 = sand.u32 %s28, 1
          %s568 = scalar_lea.sflag [#allocation9], %s567
          %s569 = sand.u32 %s186, 1
          %s570 = smul.addr %s569, 2
          %s571 = scalar_lea.vmem [#allocation10], %s570
          %572 = dma.done %s568, 32
        $region68: #{tpu_custom_call.1} parent=55 // pred_fallthru
          _
      $region56: #{tpu_custom_call.1} parent=5 // pred_fallthru
        _
    $region6: #{tpu_custom_call.1} parent=1 // loop_footer
      %s26 = sadd.s32 1, %s22
    $region7: #{tpu_custom_call.1} parent=1 // loop_footer_branch
      %21 = sbr.rel target = $region3
    $region8: #{tpu_custom_call.1} parent=1 // loop_exit
      _
    %573 = vsyncpa [#allocation3], 1
    %s574 = scalar_lea.sflag [#allocation3], 1
    %575 = vsyncpa %s574, 1
    %576 = vsyncpa [#allocation6], 1
    %s577 = scalar_lea.sflag [#allocation6], 1
    %578 = vsyncpa %s577, 1
    %579 = vsyncpa [#allocation4], 1
    %s580 = scalar_lea.sflag [#allocation4], 1
    %581 = vsyncpa %s580, 1
    %582 = vsyncpa [#allocation9], 1
    %s583 = scalar_lea.sflag [#allocation9], 1
    %584 = vsyncpa %s583, 1

</llo_original>
